<compile_context>
chip_gen: v7x
topology: tpu7x:2x2x1
jax: 0.10.0
libtpu: 0.0.40
codegen_flags: <defaults>
</compile_context>

<pallas_src>
import jax
import jax.numpy as jnp
from jax import lax
from jax.experimental import pallas as pl
from jax.experimental.pallas import tpu as pltpu


# ----------------------------------------------------------------------------
# Pallas kernel: bidirectional single-layer LSTM + Linear on final hidden state
# ----------------------------------------------------------------------------
def bilstm_fc_kernel(x_ref,      # (T*2Bb, 2D+2) bf16  block-stacked [x | x_rev | bias cols]
                     wih_ref,    # (2D+2, 4H)    bf16  [wih_f ; wih_r ; b_f ; b_r] (i/f/o cols *0.5)
                     whh_ref,    # (2H, 4H)      bf16  [whh_f ; whh_r]            (i/f/o cols *0.5)
                     wfc_ref,    # (H, D)        f32
                     bfc_ref,    # (1, D)        f32
                     out_ref):   # (2Bb, D)      f32   [fc(h_f_last) ; fc(h_r_last)]
    B2, _ = out_ref.shape          # 2*Bb rows (forward block + reverse block)
    Bb = B2 // 2
    T = x_ref.shape[0] // B2
    H2, H4 = whh_ref.shape         # (2H, 4H)
    H = H2 // 2

    # ---- hoisted input projection: ONE bf16 MXU matmul covering all T steps and
    #      both directions, biases folded in via indicator columns of x_ref.
    #      Result (T*2Bb, 4H) f32 stays as a value; sliced statically below. ----
    gx = jnp.dot(x_ref[...], wih_ref[...], preferred_element_type=jnp.float32)

    whh = whh_ref[...]             # bf16 (2H, 4H), kept resident across the recurrence

    # Row predicate for rebuilding the block-diagonal (2Bb, 2H) hidden carry:
    # forward rows (r < Bb) keep lanes [0:H), reverse rows keep lanes [H:2H).
    row_is_fwd = lax.broadcasted_iota(jnp.int32, (B2, H2), 0) < Bb

    h2 = jnp.zeros((B2, H2), jnp.bfloat16)   # block-diag carry (MXU operand -> bf16)
    c = jnp.zeros((B2, H), jnp.float32)      # cell state stays f32
    h_new = jnp.zeros((B2, H), jnp.float32)

    # Static Python loop == full unroll with static slice indices into gx.
    for t in range(T):
        # Single fused recurrent matmul for both directions (bf16 x bf16 -> f32).
        gates = gx[t * B2:(t + 1) * B2, :] + jnp.dot(
            h2, whh, preferred_element_type=jnp.float32)      # (2Bb, 4H)

        # ONE transcendental push on the full gate array.  i/f/o pre-activations
        # were pre-halved in the weights, so sigmoid(x) == 0.5*tanh(x/2) + 0.5.
        th = jnp.tanh(gates)
        i = 0.5 * th[:, 0 * H:1 * H] + 0.5
        f = 0.5 * th[:, 1 * H:2 * H] + 0.5
        g = th[:, 2 * H:3 * H]
        o = 0.5 * th[:, 3 * H:4 * H] + 0.5

        c = f * c + i * g
        h_new = o * jnp.tanh(c)                               # (2Bb, H) f32

        if t + 1 < T:
            # Rebuild the block-diagonal carry: pad once, roll (XLU) + select (VPU).
            h_pad = jnp.concatenate([h_new, jnp.zeros_like(h_new)], axis=1)  # (2Bb, 2H)
            h2 = jnp.where(row_is_fwd, h_pad,
                           pltpu.roll(h_pad, H, axis=1)).astype(jnp.bfloat16)

    # Final hidden states of both directions are exactly the last h_new (f32).
    # Fused FC for both directions: one (2Bb, H) @ (H, D) dot, single dense store.
    out_ref[...] = jnp.dot(h_new, wfc_ref[...],
                           preferred_element_type=jnp.float32) + bfc_ref[...]


# ----------------------------------------------------------------------------
# One-time parameter prep (hoisted out of the jitted forward):
# block-stacking, 0.5 pre-scale of i/f/o gate columns, bf16 casts.
# ----------------------------------------------------------------------------
def prepare_params(params):
    H = params["whh_f"].shape[0]
    # sigmoid(x) = 0.5*tanh(x/2)+0.5  ->  pre-halve i/f/o pre-activations in weights.
    gate_scale = jnp.concatenate([
        jnp.full((H,), 0.5, jnp.float32),   # i
        jnp.full((H,), 0.5, jnp.float32),   # f
        jnp.full((H,), 1.0, jnp.float32),   # g (true tanh gate: full scale)
        jnp.full((H,), 0.5, jnp.float32),   # o
    ])[None, :]

    wih_blk = jnp.concatenate(
        [params["wih_f"], params["wih_r"], params["b_f"], params["b_r"]],
        axis=0) * gate_scale                                   # (2D+2, 4H)
    whh_blk = jnp.concatenate(
        [params["whh_f"], params["whh_r"]], axis=0) * gate_scale  # (2H, 4H)

    return {
        "wih_blk": wih_blk.astype(jnp.bfloat16),
        "whh_blk": whh_blk.astype(jnp.bfloat16),
        "wfc": params["wfc"].astype(jnp.float32),              # (H, D)  keep f32
        "bfc": params["bfc"].astype(jnp.float32),              # (1, D)
    }


# ----------------------------------------------------------------------------
# Wrapper: layout plumbing (block-stacking / time reversal) + pallas_call
# ----------------------------------------------------------------------------
@jax.jit
def lstm_forward(x, prep):
    """x: (T, B, D) float32, prep: prepare_params(...)  ->  (2, B, D) float32."""
    T, B, D = x.shape
    H = prep["whh_blk"].shape[0] // 2
    C = 2 * D + 2

    # Batch-block size: <=128 rows (2*Bb) per recurrent matmul (v5e MXU height);
    # blocks go on a "parallel" grid axis (both TensorCores on v7x).
    if B <= 64:
        Bb = B
    else:
        Bb = 64
        while B % Bb:               # simple divisor search; fine for typical batches
            Bb -= 1
    G = B // Bb

    # Block-stack forward / time-reversed inputs plus bias-indicator columns:
    #   forward rows: [ x[t] | 0        | 1 | 0 ]
    #   reverse rows: [ 0    | x[T-1-t] | 0 | 1 ]
    zD = jnp.zeros((T, B, D), jnp.float32)
    one = jnp.ones((T, B, 1), jnp.float32)
    zero1 = jnp.zeros((T, B, 1), jnp.float32)
    x_f = jnp.concatenate([x, zD, one, zero1], axis=2)         # (T, B, C)
    x_r = jnp.concatenate([zD, x[::-1], zero1, one], axis=2)   # (T, B, C)
    x_blk = (jnp.concatenate([x_f.reshape(T, G, Bb, C),
                              x_r.reshape(T, G, Bb, C)], axis=2)   # (T, G, 2Bb, C)
             .transpose(1, 0, 2, 3)
             .reshape(G, T * 2 * Bb, C)
             .astype(jnp.bfloat16))

    out = pl.pallas_call(
        bilstm_fc_kernel,
        out_shape=jax.ShapeDtypeStruct((G, 2 * Bb, D), jnp.float32),
        grid=(G,),
        in_specs=[
            pl.BlockSpec((None, T * 2 * Bb, C), lambda g: (g, 0, 0)),
            pl.BlockSpec(prep["wih_blk"].shape, lambda g: (0, 0)),
            pl.BlockSpec(prep["whh_blk"].shape, lambda g: (0, 0)),
            pl.BlockSpec(prep["wfc"].shape, lambda g: (0, 0)),
            pl.BlockSpec(prep["bfc"].shape, lambda g: (0, 0)),
        ],
        out_specs=pl.BlockSpec((None, 2 * Bb, D), lambda g: (g, 0, 0)),
        compiler_params=pltpu.CompilerParams(
            dimension_semantics=("parallel",)),
    )(x_blk, prep["wih_blk"], prep["whh_blk"], prep["wfc"], prep["bfc"])

    # (G, 2Bb, D): per block, first Bb rows = forward, last Bb = reverse  ->  (2, B, D)
    return out.reshape(G, 2, Bb, D).transpose(1, 0, 2, 3).reshape(2, B, D)


# ----------------------------------------------------------------------------
# Pure-JAX reference (mirrors torch.nn.LSTM + nn.Linear) for verification
# ----------------------------------------------------------------------------
def lstm_reference(x, params):
    T, B, D = x.shape
    H = params["whh_f"].shape[0]

    def run(wih, whh, b, xs):
        def step(carry, xt):
            h, c = carry
            g = xt @ wih + h @ whh + b
            i = jax.nn.sigmoid(g[:, :H])
            f = jax.nn.sigmoid(g[:, H:2 * H])
            gg = jnp.tanh(g[:, 2 * H:3 * H])
            o = jax.nn.sigmoid(g[:, 3 * H:])
            c = f * c + i * gg
            h = o * jnp.tanh(c)
            return (h, c), None

        init = (jnp.zeros((B, H), jnp.float32), jnp.zeros((B, H), jnp.float32))
        (h, _), _ = jax.lax.scan(step, init, xs)
        return h

    h_f = run(params["wih_f"], params["whh_f"], params["b_f"], x)
    h_r = run(params["wih_r"], params["whh_r"], params["b_r"], x[::-1])
    h_out = jnp.stack([h_f, h_r], axis=0)                  # (2, B, H)
    return h_out @ params["wfc"] + params["bfc"]           # (2, B, D)


# ----------------------------------------------------------------------------
# Deterministic parameter init (PyTorch-style uniform(-1/sqrt(H), 1/sqrt(H)))
# ----------------------------------------------------------------------------
def init_params(key, input_size, hidden_size_arg):
    D = input_size
    H = hidden_size_arg * 2          # module doubles the hidden size
    k = 1.0 / jnp.sqrt(jnp.float32(H))
    keys = jax.random.split(key, 11)

    def u(kk, shape):
        return jax.random.uniform(kk, shape, jnp.float32, -k, k)

    params = {}
    # forward direction: W_ih (4H,D), W_hh (4H,H), b_ih+b_hh (4H,)
    params["wih_f"] = u(keys[0], (4 * H, D)).T                    # (D, 4H)
    params["whh_f"] = u(keys[1], (4 * H, H)).T                    # (H, 4H)
    params["b_f"] = (u(keys[2], (4 * H,)) + u(keys[3], (4 * H,)))[None, :]
    # reverse direction
    params["wih_r"] = u(keys[4], (4 * H, D)).T
    params["whh_r"] = u(keys[5], (4 * H, H)).T
    params["b_r"] = (u(keys[6], (4 * H,)) + u(keys[7], (4 * H,)))[None, :]
    # fc: Linear(H, D)
    kf = 1.0 / jnp.sqrt(jnp.float32(H))
    params["wfc"] = jax.random.uniform(keys[8], (D, H), jnp.float32, -kf, kf).T  # (H, D)
    params["bfc"] = jax.random.uniform(keys[9], (D,), jnp.float32, -kf, kf)[None, :]
    return params, H


if __name__ == "__main__":
    # Small shapes consistent with the module: seq-first input (T, B, D)
    T, B, D = 8, 4, 8          # input_size = 8
    HIDDEN_ARG = 16            # module makes H = 32, so 4H = 128 gate width

    key = jax.random.PRNGKey(0)
    k_x, k_p = jax.random.split(key)
    x = jax.random.normal(k_x, (T, B, D), jnp.float32)
    params, H = init_params(k_p, D, HIDDEN_ARG)
    prep = prepare_params(params)      # one-time weight packing (hoisted out of forward)

    out = jax.block_until_ready(lstm_forward(x, prep))
    ref = jax.block_until_ready(lstm_reference(x, params))

    assert out.shape == (2, B, D)
    # bf16 MXU operands on the recurrence -> relaxed tolerance (f32 elementwise math kept).
    assert jnp.allclose(out, ref, atol=3e-2, rtol=3e-2)
    print("KERNEL_OK")
</pallas_src>

<mosaic_0001>
module attributes {stable_mosaic.version = 11 : i64} {
  func.func @bilstm_fc_kernel(%arg0: i32, %arg1: memref<1x64x18xbf16, #tpu.memory_space<vmem>>, %arg2: memref<18x128xbf16, #tpu.memory_space<vmem>>, %arg3: memref<64x128xbf16, #tpu.memory_space<vmem>>, %arg4: memref<32x8xf32, #tpu.memory_space<vmem>>, %arg5: memref<1x8xf32, #tpu.memory_space<vmem>>, %arg6: memref<1x8x8xf32, #tpu.memory_space<vmem>>) attributes {dimension_semantics = [#tpu.dimension_semantics<parallel>], iteration_bounds = array<i64: 1>, scalar_prefetch = 0 : i64, scratch_operands = 0 : i64, tpu.core_type = #tpu.core_type<tc>, window_params = [{transform_indices = @transform_0, window_bounds = array<i64: 1, 64, 18>}, {pipeline_mode = #tpu.pipeline_mode<synchronous>, transform_indices = @transform_1, window_bounds = array<i64: 18, 128>}, {pipeline_mode = #tpu.pipeline_mode<synchronous>, transform_indices = @transform_2, window_bounds = array<i64: 64, 128>}, {pipeline_mode = #tpu.pipeline_mode<synchronous>, transform_indices = @transform_3, window_bounds = array<i64: 32, 8>}, {pipeline_mode = #tpu.pipeline_mode<synchronous>, transform_indices = @transform_4, window_bounds = array<i64: 1, 8>}, {transform_indices = @transform_5, window_bounds = array<i64: 1, 8, 8>}]} {
    %c0 = arith.constant 0 : index
    %c0_0 = arith.constant 0 : index
    %c0_1 = arith.constant 0 : index
    %0 = vector.load %arg1[%c0, %c0_0, %c0_1] : memref<1x64x18xbf16, #tpu.memory_space<vmem>>, vector<1x64x18xbf16>
    %1 = vector.shape_cast %0 : vector<1x64x18xbf16> to vector<64x18xbf16>
    %c0_2 = arith.constant 0 : index
    %c0_3 = arith.constant 0 : index
    %2 = vector.load %arg2[%c0_2, %c0_3] : memref<18x128xbf16, #tpu.memory_space<vmem>>, vector<18x128xbf16>
    %cst = arith.constant dense<0.000000e+00> : vector<64x128xf32>
    %3 = tpu.matmul %1, %2, %cst {dimension_numbers = #tpu.dot_dimension_numbers<[1], [0], [0], [1], [0, 0, 1, 1], [], []>} : vector<64x18xbf16>, vector<18x128xbf16>, vector<64x128xf32> -> vector<64x128xf32>
    %c0_4 = arith.constant 0 : index
    %c0_5 = arith.constant 0 : index
    %4 = vector.load %arg3[%c0_4, %c0_5] : memref<64x128xbf16, #tpu.memory_space<vmem>>, vector<64x128xbf16>
    %5 = tpu.iota {dimensions = array<i32: 0>} : vector<8x64xi32>
    %c4_i32 = arith.constant 4 : i32
    %6 = vector.broadcast %c4_i32 : i32 to vector<8x64xi32>
    %7 = arith.cmpi slt, %5, %6 : vector<8x64xi32>
    %cst_6 = arith.constant 0.000000e+00 : bf16
    %8 = vector.broadcast %cst_6 : bf16 to vector<8x64xbf16>
    %cst_7 = arith.constant 0.000000e+00 : f32
    %9 = vector.broadcast %cst_7 : f32 to vector<8x32xf32>
    %10 = vector.extract_strided_slice %3 {offsets = [0, 0], sizes = [8, 128], strides = [1, 1]} : vector<64x128xf32> to vector<8x128xf32>
    %cst_8 = arith.constant dense<0.000000e+00> : vector<8x128xf32>
    %11 = tpu.matmul %8, %4, %cst_8 {dimension_numbers = #tpu.dot_dimension_numbers<[1], [0], [0], [1], [0, 0, 1, 1], [], []>} : vector<8x64xbf16>, vector<64x128xbf16>, vector<8x128xf32> -> vector<8x128xf32>
    %12 = arith.addf %10, %11 : vector<8x128xf32>
    %13 = math.tanh %12 : vector<8x128xf32>
    %14 = vector.extract_strided_slice %13 {offsets = [0, 0], sizes = [8, 32], strides = [1, 1]} : vector<8x128xf32> to vector<8x32xf32>
    %cst_9 = arith.constant 5.000000e-01 : f32
    %15 = vector.broadcast %cst_9 : f32 to vector<8x32xf32>
    %16 = arith.mulf %15, %14 : vector<8x32xf32>
    %cst_10 = arith.constant 5.000000e-01 : f32
    %17 = vector.broadcast %cst_10 : f32 to vector<8x32xf32>
    %18 = arith.addf %16, %17 : vector<8x32xf32>
    %19 = vector.extract_strided_slice %13 {offsets = [0, 32], sizes = [8, 32], strides = [1, 1]} : vector<8x128xf32> to vector<8x32xf32>
    %cst_11 = arith.constant 5.000000e-01 : f32
    %20 = vector.broadcast %cst_11 : f32 to vector<8x32xf32>
    %21 = arith.mulf %20, %19 : vector<8x32xf32>
    %cst_12 = arith.constant 5.000000e-01 : f32
    %22 = vector.broadcast %cst_12 : f32 to vector<8x32xf32>
    %23 = arith.addf %21, %22 : vector<8x32xf32>
    %24 = vector.extract_strided_slice %13 {offsets = [0, 64], sizes = [8, 32], strides = [1, 1]} : vector<8x128xf32> to vector<8x32xf32>
    %25 = vector.extract_strided_slice %13 {offsets = [0, 96], sizes = [8, 32], strides = [1, 1]} : vector<8x128xf32> to vector<8x32xf32>
    %cst_13 = arith.constant 5.000000e-01 : f32
    %26 = vector.broadcast %cst_13 : f32 to vector<8x32xf32>
    %27 = arith.mulf %26, %25 : vector<8x32xf32>
    %cst_14 = arith.constant 5.000000e-01 : f32
    %28 = vector.broadcast %cst_14 : f32 to vector<8x32xf32>
    %29 = arith.addf %27, %28 : vector<8x32xf32>
    %30 = arith.mulf %23, %9 : vector<8x32xf32>
    %31 = arith.mulf %18, %24 : vector<8x32xf32>
    %32 = arith.addf %30, %31 : vector<8x32xf32>
    %33 = math.tanh %32 : vector<8x32xf32>
    %34 = arith.mulf %29, %33 : vector<8x32xf32>
    %cst_15 = arith.constant 0.000000e+00 : f32
    %35 = vector.broadcast %cst_15 : f32 to vector<8x32xf32>
    %36 = tpu.concatenate %34, %35 in 1 : vector<8x32xf32>, vector<8x32xf32> -> vector<8x64xf32>
    %c32_i32 = arith.constant 32 : i32
    %37 = tpu.dynamic_rotate %36 by %c32_i32 dim 1 : vector<8x64xf32>, i32 -> vector<8x64xf32>
    %38 = arith.select %7, %36, %37 : vector<8x64xi1>, vector<8x64xf32>
    %39 = arith.truncf %38 : vector<8x64xf32> to vector<8x64xbf16>
    %40 = vector.extract_strided_slice %3 {offsets = [8, 0], sizes = [8, 128], strides = [1, 1]} : vector<64x128xf32> to vector<8x128xf32>
    %cst_16 = arith.constant dense<0.000000e+00> : vector<8x128xf32>
    %41 = tpu.matmul %39, %4, %cst_16 {dimension_numbers = #tpu.dot_dimension_numbers<[1], [0], [0], [1], [0, 0, 1, 1], [], []>} : vector<8x64xbf16>, vector<64x128xbf16>, vector<8x128xf32> -> vector<8x128xf32>
    %42 = arith.addf %40, %41 : vector<8x128xf32>
    %43 = math.tanh %42 : vector<8x128xf32>
    %44 = vector.extract_strided_slice %43 {offsets = [0, 0], sizes = [8, 32], strides = [1, 1]} : vector<8x128xf32> to vector<8x32xf32>
    %cst_17 = arith.constant 5.000000e-01 : f32
    %45 = vector.broadcast %cst_17 : f32 to vector<8x32xf32>
    %46 = arith.mulf %45, %44 : vector<8x32xf32>
    %cst_18 = arith.constant 5.000000e-01 : f32
    %47 = vector.broadcast %cst_18 : f32 to vector<8x32xf32>
    %48 = arith.addf %46, %47 : vector<8x32xf32>
    %49 = vector.extract_strided_slice %43 {offsets = [0, 32], sizes = [8, 32], strides = [1, 1]} : vector<8x128xf32> to vector<8x32xf32>
    %cst_19 = arith.constant 5.000000e-01 : f32
    %50 = vector.broadcast %cst_19 : f32 to vector<8x32xf32>
    %51 = arith.mulf %50, %49 : vector<8x32xf32>
    %cst_20 = arith.constant 5.000000e-01 : f32
    %52 = vector.broadcast %cst_20 : f32 to vector<8x32xf32>
    %53 = arith.addf %51, %52 : vector<8x32xf32>
    %54 = vector.extract_strided_slice %43 {offsets = [0, 64], sizes = [8, 32], strides = [1, 1]} : vector<8x128xf32> to vector<8x32xf32>
    %55 = vector.extract_strided_slice %43 {offsets = [0, 96], sizes = [8, 32], strides = [1, 1]} : vector<8x128xf32> to vector<8x32xf32>
    %cst_21 = arith.constant 5.000000e-01 : f32
    %56 = vector.broadcast %cst_21 : f32 to vector<8x32xf32>
    %57 = arith.mulf %56, %55 : vector<8x32xf32>
    %cst_22 = arith.constant 5.000000e-01 : f32
    %58 = vector.broadcast %cst_22 : f32 to vector<8x32xf32>
    %59 = arith.addf %57, %58 : vector<8x32xf32>
    %60 = arith.mulf %53, %32 : vector<8x32xf32>
    %61 = arith.mulf %48, %54 : vector<8x32xf32>
    %62 = arith.addf %60, %61 : vector<8x32xf32>
    %63 = math.tanh %62 : vector<8x32xf32>
    %64 = arith.mulf %59, %63 : vector<8x32xf32>
    %cst_23 = arith.constant 0.000000e+00 : f32
    %65 = vector.broadcast %cst_23 : f32 to vector<8x32xf32>
    %66 = tpu.concatenate %64, %65 in 1 : vector<8x32xf32>, vector<8x32xf32> -> vector<8x64xf32>
    %c32_i32_24 = arith.constant 32 : i32
    %67 = tpu.dynamic_rotate %66 by %c32_i32_24 dim 1 : vector<8x64xf32>, i32 -> vector<8x64xf32>
    %68 = arith.select %7, %66, %67 : vector<8x64xi1>, vector<8x64xf32>
    %69 = arith.truncf %68 : vector<8x64xf32> to vector<8x64xbf16>
    %70 = vector.extract_strided_slice %3 {offsets = [16, 0], sizes = [8, 128], strides = [1, 1]} : vector<64x128xf32> to vector<8x128xf32>
    %cst_25 = arith.constant dense<0.000000e+00> : vector<8x128xf32>
    %71 = tpu.matmul %69, %4, %cst_25 {dimension_numbers = #tpu.dot_dimension_numbers<[1], [0], [0], [1], [0, 0, 1, 1], [], []>} : vector<8x64xbf16>, vector<64x128xbf16>, vector<8x128xf32> -> vector<8x128xf32>
    %72 = arith.addf %70, %71 : vector<8x128xf32>
    %73 = math.tanh %72 : vector<8x128xf32>
    %74 = vector.extract_strided_slice %73 {offsets = [0, 0], sizes = [8, 32], strides = [1, 1]} : vector<8x128xf32> to vector<8x32xf32>
    %cst_26 = arith.constant 5.000000e-01 : f32
    %75 = vector.broadcast %cst_26 : f32 to vector<8x32xf32>
    %76 = arith.mulf %75, %74 : vector<8x32xf32>
    %cst_27 = arith.constant 5.000000e-01 : f32
    %77 = vector.broadcast %cst_27 : f32 to vector<8x32xf32>
    %78 = arith.addf %76, %77 : vector<8x32xf32>
    %79 = vector.extract_strided_slice %73 {offsets = [0, 32], sizes = [8, 32], strides = [1, 1]} : vector<8x128xf32> to vector<8x32xf32>
    %cst_28 = arith.constant 5.000000e-01 : f32
    %80 = vector.broadcast %cst_28 : f32 to vector<8x32xf32>
    %81 = arith.mulf %80, %79 : vector<8x32xf32>
    %cst_29 = arith.constant 5.000000e-01 : f32
    %82 = vector.broadcast %cst_29 : f32 to vector<8x32xf32>
    %83 = arith.addf %81, %82 : vector<8x32xf32>
    %84 = vector.extract_strided_slice %73 {offsets = [0, 64], sizes = [8, 32], strides = [1, 1]} : vector<8x128xf32> to vector<8x32xf32>
    %85 = vector.extract_strided_slice %73 {offsets = [0, 96], sizes = [8, 32], strides = [1, 1]} : vector<8x128xf32> to vector<8x32xf32>
    %cst_30 = arith.constant 5.000000e-01 : f32
    %86 = vector.broadcast %cst_30 : f32 to vector<8x32xf32>
    %87 = arith.mulf %86, %85 : vector<8x32xf32>
    %cst_31 = arith.constant 5.000000e-01 : f32
    %88 = vector.broadcast %cst_31 : f32 to vector<8x32xf32>
    %89 = arith.addf %87, %88 : vector<8x32xf32>
    %90 = arith.mulf %83, %62 : vector<8x32xf32>
    %91 = arith.mulf %78, %84 : vector<8x32xf32>
    %92 = arith.addf %90, %91 : vector<8x32xf32>
    %93 = math.tanh %92 : vector<8x32xf32>
    %94 = arith.mulf %89, %93 : vector<8x32xf32>
    %cst_32 = arith.constant 0.000000e+00 : f32
    %95 = vector.broadcast %cst_32 : f32 to vector<8x32xf32>
    %96 = tpu.concatenate %94, %95 in 1 : vector<8x32xf32>, vector<8x32xf32> -> vector<8x64xf32>
    %c32_i32_33 = arith.constant 32 : i32
    %97 = tpu.dynamic_rotate %96 by %c32_i32_33 dim 1 : vector<8x64xf32>, i32 -> vector<8x64xf32>
    %98 = arith.select %7, %96, %97 : vector<8x64xi1>, vector<8x64xf32>
    %99 = arith.truncf %98 : vector<8x64xf32> to vector<8x64xbf16>
    %100 = vector.extract_strided_slice %3 {offsets = [24, 0], sizes = [8, 128], strides = [1, 1]} : vector<64x128xf32> to vector<8x128xf32>
    %cst_34 = arith.constant dense<0.000000e+00> : vector<8x128xf32>
    %101 = tpu.matmul %99, %4, %cst_34 {dimension_numbers = #tpu.dot_dimension_numbers<[1], [0], [0], [1], [0, 0, 1, 1], [], []>} : vector<8x64xbf16>, vector<64x128xbf16>, vector<8x128xf32> -> vector<8x128xf32>
    %102 = arith.addf %100, %101 : vector<8x128xf32>
    %103 = math.tanh %102 : vector<8x128xf32>
    %104 = vector.extract_strided_slice %103 {offsets = [0, 0], sizes = [8, 32], strides = [1, 1]} : vector<8x128xf32> to vector<8x32xf32>
    %cst_35 = arith.constant 5.000000e-01 : f32
    %105 = vector.broadcast %cst_35 : f32 to vector<8x32xf32>
    %106 = arith.mulf %105, %104 : vector<8x32xf32>
    %cst_36 = arith.constant 5.000000e-01 : f32
    %107 = vector.broadcast %cst_36 : f32 to vector<8x32xf32>
    %108 = arith.addf %106, %107 : vector<8x32xf32>
    %109 = vector.extract_strided_slice %103 {offsets = [0, 32], sizes = [8, 32], strides = [1, 1]} : vector<8x128xf32> to vector<8x32xf32>
    %cst_37 = arith.constant 5.000000e-01 : f32
    %110 = vector.broadcast %cst_37 : f32 to vector<8x32xf32>
    %111 = arith.mulf %110, %109 : vector<8x32xf32>
    %cst_38 = arith.constant 5.000000e-01 : f32
    %112 = vector.broadcast %cst_38 : f32 to vector<8x32xf32>
    %113 = arith.addf %111, %112 : vector<8x32xf32>
    %114 = vector.extract_strided_slice %103 {offsets = [0, 64], sizes = [8, 32], strides = [1, 1]} : vector<8x128xf32> to vector<8x32xf32>
    %115 = vector.extract_strided_slice %103 {offsets = [0, 96], sizes = [8, 32], strides = [1, 1]} : vector<8x128xf32> to vector<8x32xf32>
    %cst_39 = arith.constant 5.000000e-01 : f32
    %116 = vector.broadcast %cst_39 : f32 to vector<8x32xf32>
    %117 = arith.mulf %116, %115 : vector<8x32xf32>
    %cst_40 = arith.constant 5.000000e-01 : f32
    %118 = vector.broadcast %cst_40 : f32 to vector<8x32xf32>
    %119 = arith.addf %117, %118 : vector<8x32xf32>
    %120 = arith.mulf %113, %92 : vector<8x32xf32>
    %121 = arith.mulf %108, %114 : vector<8x32xf32>
    %122 = arith.addf %120, %121 : vector<8x32xf32>
    %123 = math.tanh %122 : vector<8x32xf32>
    %124 = arith.mulf %119, %123 : vector<8x32xf32>
    %cst_41 = arith.constant 0.000000e+00 : f32
    %125 = vector.broadcast %cst_41 : f32 to vector<8x32xf32>
    %126 = tpu.concatenate %124, %125 in 1 : vector<8x32xf32>, vector<8x32xf32> -> vector<8x64xf32>
    %c32_i32_42 = arith.constant 32 : i32
    %127 = tpu.dynamic_rotate %126 by %c32_i32_42 dim 1 : vector<8x64xf32>, i32 -> vector<8x64xf32>
    %128 = arith.select %7, %126, %127 : vector<8x64xi1>, vector<8x64xf32>
    %129 = arith.truncf %128 : vector<8x64xf32> to vector<8x64xbf16>
    %130 = vector.extract_strided_slice %3 {offsets = [32, 0], sizes = [8, 128], strides = [1, 1]} : vector<64x128xf32> to vector<8x128xf32>
    %cst_43 = arith.constant dense<0.000000e+00> : vector<8x128xf32>
    %131 = tpu.matmul %129, %4, %cst_43 {dimension_numbers = #tpu.dot_dimension_numbers<[1], [0], [0], [1], [0, 0, 1, 1], [], []>} : vector<8x64xbf16>, vector<64x128xbf16>, vector<8x128xf32> -> vector<8x128xf32>
    %132 = arith.addf %130, %131 : vector<8x128xf32>
    %133 = math.tanh %132 : vector<8x128xf32>
    %134 = vector.extract_strided_slice %133 {offsets = [0, 0], sizes = [8, 32], strides = [1, 1]} : vector<8x128xf32> to vector<8x32xf32>
    %cst_44 = arith.constant 5.000000e-01 : f32
    %135 = vector.broadcast %cst_44 : f32 to vector<8x32xf32>
    %136 = arith.mulf %135, %134 : vector<8x32xf32>
    %cst_45 = arith.constant 5.000000e-01 : f32
    %137 = vector.broadcast %cst_45 : f32 to vector<8x32xf32>
    %138 = arith.addf %136, %137 : vector<8x32xf32>
    %139 = vector.extract_strided_slice %133 {offsets = [0, 32], sizes = [8, 32], strides = [1, 1]} : vector<8x128xf32> to vector<8x32xf32>
    %cst_46 = arith.constant 5.000000e-01 : f32
    %140 = vector.broadcast %cst_46 : f32 to vector<8x32xf32>
    %141 = arith.mulf %140, %139 : vector<8x32xf32>
    %cst_47 = arith.constant 5.000000e-01 : f32
    %142 = vector.broadcast %cst_47 : f32 to vector<8x32xf32>
    %143 = arith.addf %141, %142 : vector<8x32xf32>
    %144 = vector.extract_strided_slice %133 {offsets = [0, 64], sizes = [8, 32], strides = [1, 1]} : vector<8x128xf32> to vector<8x32xf32>
    %145 = vector.extract_strided_slice %133 {offsets = [0, 96], sizes = [8, 32], strides = [1, 1]} : vector<8x128xf32> to vector<8x32xf32>
    %cst_48 = arith.constant 5.000000e-01 : f32
    %146 = vector.broadcast %cst_48 : f32 to vector<8x32xf32>
    %147 = arith.mulf %146, %145 : vector<8x32xf32>
    %cst_49 = arith.constant 5.000000e-01 : f32
    %148 = vector.broadcast %cst_49 : f32 to vector<8x32xf32>
    %149 = arith.addf %147, %148 : vector<8x32xf32>
    %150 = arith.mulf %143, %122 : vector<8x32xf32>
    %151 = arith.mulf %138, %144 : vector<8x32xf32>
    %152 = arith.addf %150, %151 : vector<8x32xf32>
    %153 = math.tanh %152 : vector<8x32xf32>
    %154 = arith.mulf %149, %153 : vector<8x32xf32>
    %cst_50 = arith.constant 0.000000e+00 : f32
    %155 = vector.broadcast %cst_50 : f32 to vector<8x32xf32>
    %156 = tpu.concatenate %154, %155 in 1 : vector<8x32xf32>, vector<8x32xf32> -> vector<8x64xf32>
    %c32_i32_51 = arith.constant 32 : i32
    %157 = tpu.dynamic_rotate %156 by %c32_i32_51 dim 1 : vector<8x64xf32>, i32 -> vector<8x64xf32>
    %158 = arith.select %7, %156, %157 : vector<8x64xi1>, vector<8x64xf32>
    %159 = arith.truncf %158 : vector<8x64xf32> to vector<8x64xbf16>
    %160 = vector.extract_strided_slice %3 {offsets = [40, 0], sizes = [8, 128], strides = [1, 1]} : vector<64x128xf32> to vector<8x128xf32>
    %cst_52 = arith.constant dense<0.000000e+00> : vector<8x128xf32>
    %161 = tpu.matmul %159, %4, %cst_52 {dimension_numbers = #tpu.dot_dimension_numbers<[1], [0], [0], [1], [0, 0, 1, 1], [], []>} : vector<8x64xbf16>, vector<64x128xbf16>, vector<8x128xf32> -> vector<8x128xf32>
    %162 = arith.addf %160, %161 : vector<8x128xf32>
    %163 = math.tanh %162 : vector<8x128xf32>
    %164 = vector.extract_strided_slice %163 {offsets = [0, 0], sizes = [8, 32], strides = [1, 1]} : vector<8x128xf32> to vector<8x32xf32>
    %cst_53 = arith.constant 5.000000e-01 : f32
    %165 = vector.broadcast %cst_53 : f32 to vector<8x32xf32>
    %166 = arith.mulf %165, %164 : vector<8x32xf32>
    %cst_54 = arith.constant 5.000000e-01 : f32
    %167 = vector.broadcast %cst_54 : f32 to vector<8x32xf32>
    %168 = arith.addf %166, %167 : vector<8x32xf32>
    %169 = vector.extract_strided_slice %163 {offsets = [0, 32], sizes = [8, 32], strides = [1, 1]} : vector<8x128xf32> to vector<8x32xf32>
    %cst_55 = arith.constant 5.000000e-01 : f32
    %170 = vector.broadcast %cst_55 : f32 to vector<8x32xf32>
    %171 = arith.mulf %170, %169 : vector<8x32xf32>
    %cst_56 = arith.constant 5.000000e-01 : f32
    %172 = vector.broadcast %cst_56 : f32 to vector<8x32xf32>
    %173 = arith.addf %171, %172 : vector<8x32xf32>
    %174 = vector.extract_strided_slice %163 {offsets = [0, 64], sizes = [8, 32], strides = [1, 1]} : vector<8x128xf32> to vector<8x32xf32>
    %175 = vector.extract_strided_slice %163 {offsets = [0, 96], sizes = [8, 32], strides = [1, 1]} : vector<8x128xf32> to vector<8x32xf32>
    %cst_57 = arith.constant 5.000000e-01 : f32
    %176 = vector.broadcast %cst_57 : f32 to vector<8x32xf32>
    %177 = arith.mulf %176, %175 : vector<8x32xf32>
    %cst_58 = arith.constant 5.000000e-01 : f32
    %178 = vector.broadcast %cst_58 : f32 to vector<8x32xf32>
    %179 = arith.addf %177, %178 : vector<8x32xf32>
    %180 = arith.mulf %173, %152 : vector<8x32xf32>
    %181 = arith.mulf %168, %174 : vector<8x32xf32>
    %182 = arith.addf %180, %181 : vector<8x32xf32>
    %183 = math.tanh %182 : vector<8x32xf32>
    %184 = arith.mulf %179, %183 : vector<8x32xf32>
    %cst_59 = arith.constant 0.000000e+00 : f32
    %185 = vector.broadcast %cst_59 : f32 to vector<8x32xf32>
    %186 = tpu.concatenate %184, %185 in 1 : vector<8x32xf32>, vector<8x32xf32> -> vector<8x64xf32>
    %c32_i32_60 = arith.constant 32 : i32
    %187 = tpu.dynamic_rotate %186 by %c32_i32_60 dim 1 : vector<8x64xf32>, i32 -> vector<8x64xf32>
    %188 = arith.select %7, %186, %187 : vector<8x64xi1>, vector<8x64xf32>
    %189 = arith.truncf %188 : vector<8x64xf32> to vector<8x64xbf16>
    %190 = vector.extract_strided_slice %3 {offsets = [48, 0], sizes = [8, 128], strides = [1, 1]} : vector<64x128xf32> to vector<8x128xf32>
    %cst_61 = arith.constant dense<0.000000e+00> : vector<8x128xf32>
    %191 = tpu.matmul %189, %4, %cst_61 {dimension_numbers = #tpu.dot_dimension_numbers<[1], [0], [0], [1], [0, 0, 1, 1], [], []>} : vector<8x64xbf16>, vector<64x128xbf16>, vector<8x128xf32> -> vector<8x128xf32>
    %192 = arith.addf %190, %191 : vector<8x128xf32>
    %193 = math.tanh %192 : vector<8x128xf32>
    %194 = vector.extract_strided_slice %193 {offsets = [0, 0], sizes = [8, 32], strides = [1, 1]} : vector<8x128xf32> to vector<8x32xf32>
    %cst_62 = arith.constant 5.000000e-01 : f32
    %195 = vector.broadcast %cst_62 : f32 to vector<8x32xf32>
    %196 = arith.mulf %195, %194 : vector<8x32xf32>
    %cst_63 = arith.constant 5.000000e-01 : f32
    %197 = vector.broadcast %cst_63 : f32 to vector<8x32xf32>
    %198 = arith.addf %196, %197 : vector<8x32xf32>
    %199 = vector.extract_strided_slice %193 {offsets = [0, 32], sizes = [8, 32], strides = [1, 1]} : vector<8x128xf32> to vector<8x32xf32>
    %cst_64 = arith.constant 5.000000e-01 : f32
    %200 = vector.broadcast %cst_64 : f32 to vector<8x32xf32>
    %201 = arith.mulf %200, %199 : vector<8x32xf32>
    %cst_65 = arith.constant 5.000000e-01 : f32
    %202 = vector.broadcast %cst_65 : f32 to vector<8x32xf32>
    %203 = arith.addf %201, %202 : vector<8x32xf32>
    %204 = vector.extract_strided_slice %193 {offsets = [0, 64], sizes = [8, 32], strides = [1, 1]} : vector<8x128xf32> to vector<8x32xf32>
    %205 = vector.extract_strided_slice %193 {offsets = [0, 96], sizes = [8, 32], strides = [1, 1]} : vector<8x128xf32> to vector<8x32xf32>
    %cst_66 = arith.constant 5.000000e-01 : f32
    %206 = vector.broadcast %cst_66 : f32 to vector<8x32xf32>
    %207 = arith.mulf %206, %205 : vector<8x32xf32>
    %cst_67 = arith.constant 5.000000e-01 : f32
    %208 = vector.broadcast %cst_67 : f32 to vector<8x32xf32>
    %209 = arith.addf %207, %208 : vector<8x32xf32>
    %210 = arith.mulf %203, %182 : vector<8x32xf32>
    %211 = arith.mulf %198, %204 : vector<8x32xf32>
    %212 = arith.addf %210, %211 : vector<8x32xf32>
    %213 = math.tanh %212 : vector<8x32xf32>
    %214 = arith.mulf %209, %213 : vector<8x32xf32>
    %cst_68 = arith.constant 0.000000e+00 : f32
    %215 = vector.broadcast %cst_68 : f32 to vector<8x32xf32>
    %216 = tpu.concatenate %214, %215 in 1 : vector<8x32xf32>, vector<8x32xf32> -> vector<8x64xf32>
    %c32_i32_69 = arith.constant 32 : i32
    %217 = tpu.dynamic_rotate %216 by %c32_i32_69 dim 1 : vector<8x64xf32>, i32 -> vector<8x64xf32>
    %218 = arith.select %7, %216, %217 : vector<8x64xi1>, vector<8x64xf32>
    %219 = arith.truncf %218 : vector<8x64xf32> to vector<8x64xbf16>
    %220 = vector.extract_strided_slice %3 {offsets = [56, 0], sizes = [8, 128], strides = [1, 1]} : vector<64x128xf32> to vector<8x128xf32>
    %cst_70 = arith.constant dense<0.000000e+00> : vector<8x128xf32>
    %221 = tpu.matmul %219, %4, %cst_70 {dimension_numbers = #tpu.dot_dimension_numbers<[1], [0], [0], [1], [0, 0, 1, 1], [], []>} : vector<8x64xbf16>, vector<64x128xbf16>, vector<8x128xf32> -> vector<8x128xf32>
    %222 = arith.addf %220, %221 : vector<8x128xf32>
    %223 = math.tanh %222 : vector<8x128xf32>
    %224 = vector.extract_strided_slice %223 {offsets = [0, 0], sizes = [8, 32], strides = [1, 1]} : vector<8x128xf32> to vector<8x32xf32>
    %cst_71 = arith.constant 5.000000e-01 : f32
    %225 = vector.broadcast %cst_71 : f32 to vector<8x32xf32>
    %226 = arith.mulf %225, %224 : vector<8x32xf32>
    %cst_72 = arith.constant 5.000000e-01 : f32
    %227 = vector.broadcast %cst_72 : f32 to vector<8x32xf32>
    %228 = arith.addf %226, %227 : vector<8x32xf32>
    %229 = vector.extract_strided_slice %223 {offsets = [0, 32], sizes = [8, 32], strides = [1, 1]} : vector<8x128xf32> to vector<8x32xf32>
    %cst_73 = arith.constant 5.000000e-01 : f32
    %230 = vector.broadcast %cst_73 : f32 to vector<8x32xf32>
    %231 = arith.mulf %230, %229 : vector<8x32xf32>
    %cst_74 = arith.constant 5.000000e-01 : f32
    %232 = vector.broadcast %cst_74 : f32 to vector<8x32xf32>
    %233 = arith.addf %231, %232 : vector<8x32xf32>
    %234 = vector.extract_strided_slice %223 {offsets = [0, 64], sizes = [8, 32], strides = [1, 1]} : vector<8x128xf32> to vector<8x32xf32>
    %235 = vector.extract_strided_slice %223 {offsets = [0, 96], sizes = [8, 32], strides = [1, 1]} : vector<8x128xf32> to vector<8x32xf32>
    %cst_75 = arith.constant 5.000000e-01 : f32
    %236 = vector.broadcast %cst_75 : f32 to vector<8x32xf32>
    %237 = arith.mulf %236, %235 : vector<8x32xf32>
    %cst_76 = arith.constant 5.000000e-01 : f32
    %238 = vector.broadcast %cst_76 : f32 to vector<8x32xf32>
    %239 = arith.addf %237, %238 : vector<8x32xf32>
    %240 = arith.mulf %233, %212 : vector<8x32xf32>
    %241 = arith.mulf %228, %234 : vector<8x32xf32>
    %242 = arith.addf %240, %241 : vector<8x32xf32>
    %243 = math.tanh %242 : vector<8x32xf32>
    %244 = arith.mulf %239, %243 : vector<8x32xf32>
    %c0_77 = arith.constant 0 : index
    %c0_78 = arith.constant 0 : index
    %245 = vector.load %arg4[%c0_77, %c0_78] : memref<32x8xf32, #tpu.memory_space<vmem>>, vector<32x8xf32>
    %cst_79 = arith.constant dense<0.000000e+00> : vector<8x8xf32>
    %246 = tpu.matmul %244, %245, %cst_79 {dimension_numbers = #tpu.dot_dimension_numbers<[1], [0], [0], [1], [0, 0, 1, 1], [], []>} : vector<8x32xf32>, vector<32x8xf32>, vector<8x8xf32> -> vector<8x8xf32>
    %c0_80 = arith.constant 0 : index
    %c0_81 = arith.constant 0 : index
    %247 = vector.load %arg5[%c0_80, %c0_81] : memref<1x8xf32, #tpu.memory_space<vmem>>, vector<1x8xf32>
    %248 = vector.broadcast %247 : vector<1x8xf32> to vector<8x8xf32>
    %249 = arith.addf %246, %248 : vector<8x8xf32>
    %c0_82 = arith.constant 0 : index
    %c0_83 = arith.constant 0 : index
    %c0_84 = arith.constant 0 : index
    %250 = vector.load %arg6[%c0_82, %c0_83, %c0_84] : memref<1x8x8xf32, #tpu.memory_space<vmem>>, vector<1x8x8xf32>
    %251 = vector.shape_cast %250 : vector<1x8x8xf32> to vector<8x8xf32>
    %252 = vector.shape_cast %249 : vector<8x8xf32> to vector<1x8x8xf32>
    tpu.vector_store %arg6[%c0_82, %c0_83, %c0_84], %252 {strides = array<i32>} : memref<1x8x8xf32, #tpu.memory_space<vmem>>, vector<1x8x8xf32>,
    return
  }
  func.func @transform_0(%arg0: i32) -> (i32, i32, i32) {
    %c0_i32 = arith.constant 0 : i32
    %c0_i32_0 = arith.constant 0 : i32
    %c0_i32_1 = arith.constant 0 : i32
    return %arg0, %c0_i32, %c0_i32_0 : i32, i32, i32
  }
  func.func @transform_1(%arg0: i32) -> (i32, i32) {
    %c0_i32 = arith.constant 0 : i32
    %c0_i32_0 = arith.constant 0 : i32
    %c0_i32_1 = arith.constant 0 : i32
    return %c0_i32, %c0_i32_0 : i32, i32
  }
  func.func @transform_2(%arg0: i32) -> (i32, i32) {
    %c0_i32 = arith.constant 0 : i32
    %c0_i32_0 = arith.constant 0 : i32
    %c0_i32_1 = arith.constant 0 : i32
    return %c0_i32, %c0_i32_0 : i32, i32
  }
  func.func @transform_3(%arg0: i32) -> (i32, i32) {
    %c0_i32 = arith.constant 0 : i32
    %c0_i32_0 = arith.constant 0 : i32
    %c0_i32_1 = arith.constant 0 : i32
    return %c0_i32, %c0_i32_0 : i32, i32
  }
  func.func @transform_4(%arg0: i32) -> (i32, i32) {
    %c0_i32 = arith.constant 0 : i32
    %c0_i32_0 = arith.constant 0 : i32
    %c0_i32_1 = arith.constant 0 : i32
    return %c0_i32, %c0_i32_0 : i32, i32
  }
  func.func @transform_5(%arg0: i32) -> (i32, i32, i32) {
    %c0_i32 = arith.constant 0 : i32
    %c0_i32_0 = arith.constant 0 : i32
    %c0_i32_1 = arith.constant 0 : i32
    return %arg0, %c0_i32, %c0_i32_0 : i32, i32, i32
  }
}

</mosaic_0001>

<llo_original>
// kernel: lstm_forward.1
$region0: #{lstm_forward.1}
  #allocation0 [shape = 'u32[]', space=smem, size = 0x4, offset = 0x4, fixed_abs, tag = 'smem constant byte address 0x4 - core index']
  #allocation1 [shape = 'u32[144,128]{1,0:T(1,128)}', space=vmem, size = 0x12000, scoped, tag = 'internal scratch']
  %s0 = inlined_call_operand.vmem [shape: bf16[1,64,18], index: 0, kind: input, shape index: {}]
  %s1 = inlined_call_operand.vmem [shape: bf16[18,128], index: 1, kind: input, shape index: {}]
  %s2 = inlined_call_operand.vmem [shape: bf16[64,128], index: 2, kind: input, shape index: {}]
  %s3 = inlined_call_operand.vmem [shape: f32[32,8], index: 3, kind: input, shape index: {}]
  %s4 = inlined_call_operand.vmem [shape: f32[1,8], index: 4, kind: input, shape index: {}]
  %s5 = inlined_call_operand.hbm [shape: f32[1,8,8], index: 5, kind: output, shape index: {}]
  %s6 = sld [smem:[#allocation0]]
  $region30: #{lstm_forward.1} parent=0
    _
  %s8 = ssub.s32 1, %s6
  %s9 = scalar_select 0, %s8, %s6
  $region1: #{lstm_forward.1} parent=0
    #allocation2 [shape = 'u8[4096]{0}', space=vmem, size = 0x1000, scoped, tag = 'output window, operand 0, single buffered']
    #allocation3 [shape = 's32[1]{0}', space=sflag, size = 0x4, scoped, tag = 'scoped memory for lstm_forward.1']
    %10 = vsyncpa [#allocation3], 0
    // Predicated region
    $region2: #{lstm_forward.1} parent=1 // pred_check
      _
    $region3: #{lstm_forward.1} parent=1 // pred_check_branch
      %12 = sbr.rel (0) target = $region5
    $region4: #{lstm_forward.1} parent=1 // pred_region
      _
    $region5: #{lstm_forward.1} parent=1 // pred_fallthru
      _
    // Predicated region
    $region6: #{lstm_forward.1} parent=1 // pred_check
      _
    $region7: #{lstm_forward.1} parent=1 // pred_check_branch
      %14 = sbr.rel (0) target = $region9
    $region8: #{lstm_forward.1} parent=1 // pred_region
      _
    $region9: #{lstm_forward.1} parent=1 // pred_fallthru
      _
    // Predicated region
    $region10: #{lstm_forward.1} parent=1 // pred_check
      _
    $region11: #{lstm_forward.1} parent=1 // pred_check_branch
      %16 = sbr.rel (0) target = $region13
    $region12: #{lstm_forward.1} parent=1 // pred_region
      _
    $region13: #{lstm_forward.1} parent=1 // pred_fallthru
      _
    // Predicated region
    $region14: #{lstm_forward.1} parent=1 // pred_check
      _
    $region15: #{lstm_forward.1} parent=1 // pred_check_branch
      %18 = sbr.rel (0) target = $region17
    $region16: #{lstm_forward.1} parent=1 // pred_region
      _
    $region17: #{lstm_forward.1} parent=1 // pred_fallthru
      _
    // Predicated region
    $region18: #{lstm_forward.1} parent=1 // pred_check
      _
    $region19: #{lstm_forward.1} parent=1 // pred_check_branch
      %20 = sbr.rel (0) target = $region21
    $region20: #{lstm_forward.1} parent=1 // pred_region
      _
    $region21: #{lstm_forward.1} parent=1 // pred_fallthru
      _
    %v22 = vld [vmem:[%s0] sm:$0xf]
    %v23 = vld [vmem:[%s0 + $0x4] sm:$0xf]
    %v24 = vld [vmem:[%s0 + $0x8] sm:$0xf]
    %v25 = vld [vmem:[%s0 + $0xc] sm:$0xf]
    %v26 = vld [vmem:[%s0 + $0x10] sm:$0xf]
    %v27 = vld [vmem:[%s0 + $0x14] sm:$0xf]
    %v28 = vld [vmem:[%s0 + $0x18] sm:$0xf]
    %v29 = vld [vmem:[%s0 + $0x1c] sm:$0xf]
    %v30 = vld [vmem:[%s1] sm:$0xf]
    %v31 = vld [vmem:[%s1 + $0x4] sm:$0xf]
    %v32 = vld [vmem:[%s1 + $0x8] sm:$0x1]
    %v41 = vunpack.c.l.b16 %v22
    %v42 = vunpack.c.l.b16 %v23
    %v43 = vunpack.c.l.b16 %v24
    %v44 = vunpack.c.l.b16 %v25
    %v45 = vunpack.c.l.b16 %v26
    %v46 = vunpack.c.l.b16 %v27
    %v47 = vunpack.c.l.b16 %v28
    %v48 = vunpack.c.l.b16 %v29
    %v49 = vpack.c.b16 %v42, %v41
    %v50 = vpack.c.b16 %v44, %v43
    %v51 = vpack.c.b16 %v46, %v45
    %v52 = vpack.c.b16 %v48, %v47
    %v56 = vunpack.c.l.b16 %v30
    %v57 = vunpack.c.l.b16 %v31
    %v58 = vunpack.c.l.b16 %v32
    %v59 = vpack.c.b16 %v57, %v56
    %v60 = vpack.c.b16 %v58, %v58
    %vm62 = vcmask 146432
    %v64 = vsel %vm62, %v49, 0
    %v67 = vsel %vm62, %v50, 0
    %v70 = vsel %vm62, %v51, 0
    %v73 = vsel %vm62, %v52, 0
    %vm75 = vcmask 1040384
    %v77 = vsel %vm75, %v60, 0
    %79 = vmatprep.subr.bf16.mxu0 0
    %80 = vmatpush1.bf16.msra.mxu0 %v59
    %81 = vmatprep.subr.bf16.mxu0 0
    %82 = vmatpush1.bf16.msra.mxu0 %v77
    %83 = vmatprep.subr.bf16.mxu0 0
    %84 = vmatpush1.bf16.msra.mxu0 0
    %85 = vmatprep.subr.bf16.mxu0 0
    %86 = vmatpush1.bf16.msra.mxu0 0
    %87 = vmatprep.subr.bf16.mxu0 0
    %88 = vmatpush1.bf16.msra.mxu0 0
    %89 = vmatprep.subr.bf16.mxu0 0
    %90 = vmatpush1.bf16.msra.mxu0 0
    %91 = vmatprep.subr.bf16.mxu0 0
    %92 = vmatpush1.bf16.msra.mxu0 0
    %93 = vmatprep.subr.bf16.mxu0 0
    %94 = vmatpush1.bf16.msra.mxu0 0
    %95 = vmatprep.subr.bf16.mxu0 0
    %96 = vmatpush1.bf16.msra.mxu0 0
    %97 = vmatprep.subr.bf16.mxu0 0
    %98 = vmatpush1.bf16.msra.mxu0 0
    %99 = vmatprep.subr.bf16.mxu0 0
    %100 = vmatpush1.bf16.msra.mxu0 0
    %101 = vmatprep.subr.bf16.mxu0 0
    %102 = vmatpush1.bf16.msra.mxu0 0
    %103 = vmatprep.subr.bf16.mxu0 0
    %104 = vmatpush1.bf16.msra.mxu0 0
    %105 = vmatprep.subr.bf16.mxu0 0
    %106 = vmatpush1.bf16.msra.mxu0 0
    %107 = vmatprep.subr.bf16.mxu0 0
    %108 = vmatpush1.bf16.msra.mxu0 0
    %109 = vmatprep.subr.bf16.mxu0 0
    %110 = vmatpush1.bf16.msra.mxu0 0
    %111 = vmatprep.mubr.bf16.mxu0 0
    %112 = vmatmul.mubr.bf16.gmra.mrb[0].mxu0 %v64
    %v113 = vpop.f32.mrb[0].mxu0
    %v114 = vadd.f32 0.0, %v113
    %v115 = vpop.f32.mrb[0].mxu0
    %v116 = vpop.f32.mrb[0].mxu0
    %v117 = vadd.f32 0.0, %v116
    %v118 = vpop.f32.mrb[0].mxu0
    %119 = vmatprep.mubr.bf16.mxu0 0
    %120 = vmatmul.mubr.bf16.gmra.mrb[0].mxu0 %v67
    %v121 = vpop.f32.mrb[0].mxu0
    %v122 = vadd.f32 0.0, %v121
    %v123 = vpop.f32.mrb[0].mxu0
    %v124 = vpop.f32.mrb[0].mxu0
    %v125 = vadd.f32 0.0, %v124
    %v126 = vpop.f32.mrb[0].mxu0
    %127 = vmatprep.mubr.bf16.mxu0 0
    %128 = vmatmul.mubr.bf16.gmra.mrb[0].mxu0 %v70
    %v129 = vpop.f32.mrb[0].mxu0
    %v130 = vadd.f32 0.0, %v129
    %v131 = vpop.f32.mrb[0].mxu0
    %v132 = vpop.f32.mrb[0].mxu0
    %v133 = vadd.f32 0.0, %v132
    %v134 = vpop.f32.mrb[0].mxu0
    %135 = vmatprep.mubr.bf16.mxu0 0
    %136 = vmatmul.mubr.bf16.gmra.mrb[0].mxu0 %v73
    %v137 = vpop.f32.mrb[0].mxu0
    %v138 = vadd.f32 0.0, %v137
    %v139 = vpop.f32.mrb[0].mxu0
    %v140 = vpop.f32.mrb[0].mxu0
    %v141 = vadd.f32 0.0, %v140
    %v142 = vpop.f32.mrb[0].mxu0
    %143 = vdwg.mxu0
    %v144 = vld [vmem:[%s2] sm:$0xf]
    %v145 = vld [vmem:[%s2 + $0x4] sm:$0xf]
    %v146 = vld [vmem:[%s2 + $0x8] sm:$0xf]
    %v147 = vld [vmem:[%s2 + $0xc] sm:$0xf]
    %v148 = vld [vmem:[%s2 + $0x10] sm:$0xf]
    %v149 = vld [vmem:[%s2 + $0x14] sm:$0xf]
    %v150 = vld [vmem:[%s2 + $0x18] sm:$0xf]
    %v151 = vld [vmem:[%s2 + $0x1c] sm:$0xf]
    %v152 = vlaneseq
    %v153 = vshrl.u32 %v152, 7
    %vm154 = vcmp.lt.s32.totalorder %v153, 4
    %v163 = vunpack.c.l.b16 %v144
    %v164 = vunpack.c.l.b16 %v145
    %v165 = vunpack.c.l.b16 %v146
    %v166 = vunpack.c.l.b16 %v147
    %v167 = vunpack.c.l.b16 %v148
    %v168 = vunpack.c.l.b16 %v149
    %v169 = vunpack.c.l.b16 %v150
    %v170 = vunpack.c.l.b16 %v151
    %v171 = vpack.c.b16 %v164, %v163
    %v172 = vpack.c.b16 %v166, %v165
    %v173 = vpack.c.b16 %v168, %v167
    %v174 = vpack.c.b16 %v170, %v169
    %vm179 = vcmask 523264
    %v181 = vsel %vm179, 0, 0
    %183 = vmatprep.subr.bf16.mxu0 0
    %184 = vmatpush1.bf16.msra.mxu0 %v171
    %185 = vmatprep.subr.bf16.mxu0 0
    %186 = vmatpush1.bf16.msra.mxu0 %v172
    %187 = vmatprep.subr.bf16.mxu0 0
    %188 = vmatpush1.bf16.msra.mxu0 %v173
    %189 = vmatprep.subr.bf16.mxu0 0
    %190 = vmatpush1.bf16.msra.mxu0 %v174
    %191 = vmatprep.subr.bf16.mxu0 0
    %192 = vmatpush1.bf16.msra.mxu0 0
    %193 = vmatprep.subr.bf16.mxu0 0
    %194 = vmatpush1.bf16.msra.mxu0 0
    %195 = vmatprep.subr.bf16.mxu0 0
    %196 = vmatpush1.bf16.msra.mxu0 0
    %197 = vmatprep.subr.bf16.mxu0 0
    %198 = vmatpush1.bf16.msra.mxu0 0
    %199 = vmatprep.subr.bf16.mxu0 0
    %200 = vmatpush1.bf16.msra.mxu0 0
    %201 = vmatprep.subr.bf16.mxu0 0
    %202 = vmatpush1.bf16.msra.mxu0 0
    %203 = vmatprep.subr.bf16.mxu0 0
    %204 = vmatpush1.bf16.msra.mxu0 0
    %205 = vmatprep.subr.bf16.mxu0 0
    %206 = vmatpush1.bf16.msra.mxu0 0
    %207 = vmatprep.subr.bf16.mxu0 0
    %208 = vmatpush1.bf16.msra.mxu0 0
    %209 = vmatprep.subr.bf16.mxu0 0
    %210 = vmatpush1.bf16.msra.mxu0 0
    %211 = vmatprep.subr.bf16.mxu0 0
    %212 = vmatpush1.bf16.msra.mxu0 0
    %213 = vmatprep.subr.bf16.mxu0 0
    %214 = vmatpush1.bf16.msra.mxu0 0
    %215 = vmatprep.mubr.bf16.mxu0 0
    %216 = vmatmul.mubr.bf16.gmra.mrb[0].mxu0 %v181
    %v217 = vpop.f32.mrb[0].mxu0
    %v218 = vadd.f32 0.0, %v217
    %v219 = vpop.f32.mrb[0].mxu0
    %v220 = vpop.f32.mrb[0].mxu0
    %v221 = vpop.f32.mrb[0].mxu0
    %222 = vdwg.mxu0
    %v223 = vadd.f32 %v114, %v218
    %v224 = vtanh.pop %v223
    %v225 = vmul.f32 %v224, 0.5
    %v226 = vadd.f32 %v225, 0.5
    %v227 = vmul.f32 %v226, 0.0
    %229 = vrot.lane.b32.xlu0 %v224, 64
    %v230 = vpop.permute.xlu0 %229
    %v232 = vmul.f32 %v226, %v230
    %234 = vrot.lane.b32.xlu0 %v232, 32
    %v235 = vpop.permute.xlu0 %234
    %v237 = vadd.f32 %v227, %v235
    %v238 = vtanh.pop %v237
    %240 = vrot.lane.b32.xlu0 %v238, 64
    %v241 = vpop.permute.xlu0 %240
    %v243 = vmul.f32 %v226, %v241
    %245 = vrot.lane.b32.xlu0 %v243, 32
    %v246 = vpop.permute.xlu0 %245
    %vm248 = vcmask 261120
    %v249 = vsel %vm248, %v246, 0.0
    %vm250 = vcmask 1048064
    %251 = vrot.lane.b32.xlu0 %v249, 64
    %v252 = vpop.permute.xlu0 %251
    %v253 = vsel %vm250, %v252, %v249
    %254 = vrot.lane.b32.xlu0 %v253, 64
    %v255 = vpop.permute.xlu0 %254
    %v256 = vsel %vm250, %v255, %v249
    %258 = vrot.lane.b32.xlu0 %v256, 96
    %v259 = vpop.permute.xlu0 %258
    %v261 = vsel %vm154, %v249, %v259
    %v262 = vpack.c.bf16 %v261, %v261
    %v264 = vsel %vm179, %v262, 0
    %266 = vmatprep.subr.bf16.mxu0 0
    %267 = vmatpush1.bf16.msra.mxu0 %v171
    %268 = vmatprep.subr.bf16.mxu0 0
    %269 = vmatpush1.bf16.msra.mxu0 %v172
    %270 = vmatprep.subr.bf16.mxu0 0
    %271 = vmatpush1.bf16.msra.mxu0 %v173
    %272 = vmatprep.subr.bf16.mxu0 0
    %273 = vmatpush1.bf16.msra.mxu0 %v174
    %274 = vmatprep.subr.bf16.mxu0 0
    %275 = vmatpush1.bf16.msra.mxu0 0
    %276 = vmatprep.subr.bf16.mxu0 0
    %277 = vmatpush1.bf16.msra.mxu0 0
    %278 = vmatprep.subr.bf16.mxu0 0
    %279 = vmatpush1.bf16.msra.mxu0 0
    %280 = vmatprep.subr.bf16.mxu0 0
    %281 = vmatpush1.bf16.msra.mxu0 0
    %282 = vmatprep.subr.bf16.mxu0 0
    %283 = vmatpush1.bf16.msra.mxu0 0
    %284 = vmatprep.subr.bf16.mxu0 0
    %285 = vmatpush1.bf16.msra.mxu0 0
    %286 = vmatprep.subr.bf16.mxu0 0
    %287 = vmatpush1.bf16.msra.mxu0 0
    %288 = vmatprep.subr.bf16.mxu0 0
    %289 = vmatpush1.bf16.msra.mxu0 0
    %290 = vmatprep.subr.bf16.mxu0 0
    %291 = vmatpush1.bf16.msra.mxu0 0
    %292 = vmatprep.subr.bf16.mxu0 0
    %293 = vmatpush1.bf16.msra.mxu0 0
    %294 = vmatprep.subr.bf16.mxu0 0
    %295 = vmatpush1.bf16.msra.mxu0 0
    %296 = vmatprep.subr.bf16.mxu0 0
    %297 = vmatpush1.bf16.msra.mxu0 0
    %298 = vmatprep.mubr.bf16.mxu0 0
    %299 = vmatmul.mubr.bf16.gmra.mrb[0].mxu0 %v264
    %v300 = vpop.f32.mrb[0].mxu0
    %v301 = vadd.f32 0.0, %v300
    %v302 = vpop.f32.mrb[0].mxu0
    %v303 = vpop.f32.mrb[0].mxu0
    %v304 = vpop.f32.mrb[0].mxu0
    %305 = vdwg.mxu0
    %v306 = vadd.f32 %v117, %v301
    %v307 = vtanh.pop %v306
    %v308 = vmul.f32 %v307, 0.5
    %v309 = vadd.f32 %v308, 0.5
    %v310 = vmul.f32 %v309, %v237
    %312 = vrot.lane.b32.xlu0 %v307, 64
    %v313 = vpop.permute.xlu0 %312
    %v315 = vmul.f32 %v309, %v313
    %317 = vrot.lane.b32.xlu0 %v315, 32
    %v318 = vpop.permute.xlu0 %317
    %v320 = vadd.f32 %v310, %v318
    %v321 = vtanh.pop %v320
    %323 = vrot.lane.b32.xlu0 %v321, 64
    %v324 = vpop.permute.xlu0 %323
    %v326 = vmul.f32 %v309, %v324
    %328 = vrot.lane.b32.xlu0 %v326, 32
    %v329 = vpop.permute.xlu0 %328
    %v331 = vsel %vm248, %v329, 0.0
    %332 = vrot.lane.b32.xlu0 %v331, 64
    %v333 = vpop.permute.xlu0 %332
    %v334 = vsel %vm250, %v333, %v331
    %335 = vrot.lane.b32.xlu0 %v334, 64
    %v336 = vpop.permute.xlu0 %335
    %v337 = vsel %vm250, %v336, %v331
    %339 = vrot.lane.b32.xlu0 %v337, 96
    %v340 = vpop.permute.xlu0 %339
    %v342 = vsel %vm154, %v331, %v340
    %v343 = vpack.c.bf16 %v342, %v342
    %v345 = vsel %vm179, %v343, 0
    %347 = vmatprep.subr.bf16.mxu0 0
    %348 = vmatpush1.bf16.msra.mxu0 %v171
    %349 = vmatprep.subr.bf16.mxu0 0
    %350 = vmatpush1.bf16.msra.mxu0 %v172
    %351 = vmatprep.subr.bf16.mxu0 0
    %352 = vmatpush1.bf16.msra.mxu0 %v173
    %353 = vmatprep.subr.bf16.mxu0 0
    %354 = vmatpush1.bf16.msra.mxu0 %v174
    %355 = vmatprep.subr.bf16.mxu0 0
    %356 = vmatpush1.bf16.msra.mxu0 0
    %357 = vmatprep.subr.bf16.mxu0 0
    %358 = vmatpush1.bf16.msra.mxu0 0
    %359 = vmatprep.subr.bf16.mxu0 0
    %360 = vmatpush1.bf16.msra.mxu0 0
    %361 = vmatprep.subr.bf16.mxu0 0
    %362 = vmatpush1.bf16.msra.mxu0 0
    %363 = vmatprep.subr.bf16.mxu0 0
    %364 = vmatpush1.bf16.msra.mxu0 0
    %365 = vmatprep.subr.bf16.mxu0 0
    %366 = vmatpush1.bf16.msra.mxu0 0
    %367 = vmatprep.subr.bf16.mxu0 0
    %368 = vmatpush1.bf16.msra.mxu0 0
    %369 = vmatprep.subr.bf16.mxu0 0
    %370 = vmatpush1.bf16.msra.mxu0 0
    %371 = vmatprep.subr.bf16.mxu0 0
    %372 = vmatpush1.bf16.msra.mxu0 0
    %373 = vmatprep.subr.bf16.mxu0 0
    %374 = vmatpush1.bf16.msra.mxu0 0
    %375 = vmatprep.subr.bf16.mxu0 0
    %376 = vmatpush1.bf16.msra.mxu0 0
    %377 = vmatprep.subr.bf16.mxu0 0
    %378 = vmatpush1.bf16.msra.mxu0 0
    %379 = vmatprep.mubr.bf16.mxu0 0
    %380 = vmatmul.mubr.bf16.gmra.mrb[0].mxu0 %v345
    %v381 = vpop.f32.mrb[0].mxu0
    %v382 = vadd.f32 0.0, %v381
    %v383 = vpop.f32.mrb[0].mxu0
    %v384 = vpop.f32.mrb[0].mxu0
    %v385 = vpop.f32.mrb[0].mxu0
    %386 = vdwg.mxu0
    %v387 = vadd.f32 %v122, %v382
    %v388 = vtanh.pop %v387
    %v389 = vmul.f32 %v388, 0.5
    %v390 = vadd.f32 %v389, 0.5
    %v391 = vmul.f32 %v390, %v320
    %393 = vrot.lane.b32.xlu0 %v388, 64
    %v394 = vpop.permute.xlu0 %393
    %v396 = vmul.f32 %v390, %v394
    %398 = vrot.lane.b32.xlu0 %v396, 32
    %v399 = vpop.permute.xlu0 %398
    %v401 = vadd.f32 %v391, %v399
    %v402 = vtanh.pop %v401
    %404 = vrot.lane.b32.xlu0 %v402, 64
    %v405 = vpop.permute.xlu0 %404
    %v407 = vmul.f32 %v390, %v405
    %409 = vrot.lane.b32.xlu0 %v407, 32
    %v410 = vpop.permute.xlu0 %409
    %v412 = vsel %vm248, %v410, 0.0
    %413 = vrot.lane.b32.xlu0 %v412, 64
    %v414 = vpop.permute.xlu0 %413
    %v415 = vsel %vm250, %v414, %v412
    %416 = vrot.lane.b32.xlu0 %v415, 64
    %v417 = vpop.permute.xlu0 %416
    %v418 = vsel %vm250, %v417, %v412
    %420 = vrot.lane.b32.xlu0 %v418, 96
    %v421 = vpop.permute.xlu0 %420
    %v423 = vsel %vm154, %v412, %v421
    %v424 = vpack.c.bf16 %v423, %v423
    %v426 = vsel %vm179, %v424, 0
    %428 = vmatprep.subr.bf16.mxu0 0
    %429 = vmatpush1.bf16.msra.mxu0 %v171
    %430 = vmatprep.subr.bf16.mxu0 0
    %431 = vmatpush1.bf16.msra.mxu0 %v172
    %432 = vmatprep.subr.bf16.mxu0 0
    %433 = vmatpush1.bf16.msra.mxu0 %v173
    %434 = vmatprep.subr.bf16.mxu0 0
    %435 = vmatpush1.bf16.msra.mxu0 %v174
    %436 = vmatprep.subr.bf16.mxu0 0
    %437 = vmatpush1.bf16.msra.mxu0 0
    %438 = vmatprep.subr.bf16.mxu0 0
    %439 = vmatpush1.bf16.msra.mxu0 0
    %440 = vmatprep.subr.bf16.mxu0 0
    %441 = vmatpush1.bf16.msra.mxu0 0
    %442 = vmatprep.subr.bf16.mxu0 0
    %443 = vmatpush1.bf16.msra.mxu0 0
    %444 = vmatprep.subr.bf16.mxu0 0
    %445 = vmatpush1.bf16.msra.mxu0 0
    %446 = vmatprep.subr.bf16.mxu0 0
    %447 = vmatpush1.bf16.msra.mxu0 0
    %448 = vmatprep.subr.bf16.mxu0 0
    %449 = vmatpush1.bf16.msra.mxu0 0
    %450 = vmatprep.subr.bf16.mxu0 0
    %451 = vmatpush1.bf16.msra.mxu0 0
    %452 = vmatprep.subr.bf16.mxu0 0
    %453 = vmatpush1.bf16.msra.mxu0 0
    %454 = vmatprep.subr.bf16.mxu0 0
    %455 = vmatpush1.bf16.msra.mxu0 0
    %456 = vmatprep.subr.bf16.mxu0 0
    %457 = vmatpush1.bf16.msra.mxu0 0
    %458 = vmatprep.subr.bf16.mxu0 0
    %459 = vmatpush1.bf16.msra.mxu0 0
    %460 = vmatprep.mubr.bf16.mxu0 0
    %461 = vmatmul.mubr.bf16.gmra.mrb[0].mxu0 %v426
    %v462 = vpop.f32.mrb[0].mxu0
    %v463 = vadd.f32 0.0, %v462
    %v464 = vpop.f32.mrb[0].mxu0
    %v465 = vpop.f32.mrb[0].mxu0
    %v466 = vpop.f32.mrb[0].mxu0
    %467 = vdwg.mxu0
    %v468 = vadd.f32 %v125, %v463
    %v469 = vtanh.pop %v468
    %v470 = vmul.f32 %v469, 0.5
    %v471 = vadd.f32 %v470, 0.5
    %v472 = vmul.f32 %v471, %v401
    %474 = vrot.lane.b32.xlu0 %v469, 64
    %v475 = vpop.permute.xlu0 %474
    %v477 = vmul.f32 %v471, %v475
    %479 = vrot.lane.b32.xlu0 %v477, 32
    %v480 = vpop.permute.xlu0 %479
    %v482 = vadd.f32 %v472, %v480
    %v483 = vtanh.pop %v482
    %485 = vrot.lane.b32.xlu0 %v483, 64
    %v486 = vpop.permute.xlu0 %485
    %v488 = vmul.f32 %v471, %v486
    %490 = vrot.lane.b32.xlu0 %v488, 32
    %v491 = vpop.permute.xlu0 %490
    %v493 = vsel %vm248, %v491, 0.0
    %494 = vrot.lane.b32.xlu0 %v493, 64
    %v495 = vpop.permute.xlu0 %494
    %v496 = vsel %vm250, %v495, %v493
    %497 = vrot.lane.b32.xlu0 %v496, 64
    %v498 = vpop.permute.xlu0 %497
    %v499 = vsel %vm250, %v498, %v493
    %501 = vrot.lane.b32.xlu0 %v499, 96
    %v502 = vpop.permute.xlu0 %501
    %v504 = vsel %vm154, %v493, %v502
    %v505 = vpack.c.bf16 %v504, %v504
    %v507 = vsel %vm179, %v505, 0
    %509 = vmatprep.subr.bf16.mxu0 0
    %510 = vmatpush1.bf16.msra.mxu0 %v171
    %511 = vmatprep.subr.bf16.mxu0 0
    %512 = vmatpush1.bf16.msra.mxu0 %v172
    %513 = vmatprep.subr.bf16.mxu0 0
    %514 = vmatpush1.bf16.msra.mxu0 %v173
    %515 = vmatprep.subr.bf16.mxu0 0
    %516 = vmatpush1.bf16.msra.mxu0 %v174
    %517 = vmatprep.subr.bf16.mxu0 0
    %518 = vmatpush1.bf16.msra.mxu0 0
    %519 = vmatprep.subr.bf16.mxu0 0
    %520 = vmatpush1.bf16.msra.mxu0 0
    %521 = vmatprep.subr.bf16.mxu0 0
    %522 = vmatpush1.bf16.msra.mxu0 0
    %523 = vmatprep.subr.bf16.mxu0 0
    %524 = vmatpush1.bf16.msra.mxu0 0
    %525 = vmatprep.subr.bf16.mxu0 0
    %526 = vmatpush1.bf16.msra.mxu0 0
    %527 = vmatprep.subr.bf16.mxu0 0
    %528 = vmatpush1.bf16.msra.mxu0 0
    %529 = vmatprep.subr.bf16.mxu0 0
    %530 = vmatpush1.bf16.msra.mxu0 0
    %531 = vmatprep.subr.bf16.mxu0 0
    %532 = vmatpush1.bf16.msra.mxu0 0
    %533 = vmatprep.subr.bf16.mxu0 0
    %534 = vmatpush1.bf16.msra.mxu0 0
    %535 = vmatprep.subr.bf16.mxu0 0
    %536 = vmatpush1.bf16.msra.mxu0 0
    %537 = vmatprep.subr.bf16.mxu0 0
    %538 = vmatpush1.bf16.msra.mxu0 0
    %539 = vmatprep.subr.bf16.mxu0 0
    %540 = vmatpush1.bf16.msra.mxu0 0
    %541 = vmatprep.mubr.bf16.mxu0 0
    %542 = vmatmul.mubr.bf16.gmra.mrb[0].mxu0 %v507
    %v543 = vpop.f32.mrb[0].mxu0
    %v544 = vadd.f32 0.0, %v543
    %v545 = vpop.f32.mrb[0].mxu0
    %v546 = vpop.f32.mrb[0].mxu0
    %v547 = vpop.f32.mrb[0].mxu0
    %548 = vdwg.mxu0
    %v549 = vadd.f32 %v130, %v544
    %v550 = vtanh.pop %v549
    %v551 = vmul.f32 %v550, 0.5
    %v552 = vadd.f32 %v551, 0.5
    %v553 = vmul.f32 %v552, %v482
    %555 = vrot.lane.b32.xlu0 %v550, 64
    %v556 = vpop.permute.xlu0 %555
    %v558 = vmul.f32 %v552, %v556
    %560 = vrot.lane.b32.xlu0 %v558, 32
    %v561 = vpop.permute.xlu0 %560
    %v563 = vadd.f32 %v553, %v561
    %v564 = vtanh.pop %v563
    %566 = vrot.lane.b32.xlu0 %v564, 64
    %v567 = vpop.permute.xlu0 %566
    %v569 = vmul.f32 %v552, %v567
    %571 = vrot.lane.b32.xlu0 %v569, 32
    %v572 = vpop.permute.xlu0 %571
    %v574 = vsel %vm248, %v572, 0.0
    %575 = vrot.lane.b32.xlu0 %v574, 64
    %v576 = vpop.permute.xlu0 %575
    %v577 = vsel %vm250, %v576, %v574
    %578 = vrot.lane.b32.xlu0 %v577, 64
    %v579 = vpop.permute.xlu0 %578
    %v580 = vsel %vm250, %v579, %v574
    %582 = vrot.lane.b32.xlu0 %v580, 96
    %v583 = vpop.permute.xlu0 %582
    %v585 = vsel %vm154, %v574, %v583
    %v586 = vpack.c.bf16 %v585, %v585
    %v588 = vsel %vm179, %v586, 0
    %590 = vmatprep.subr.bf16.mxu0 0
    %591 = vmatpush1.bf16.msra.mxu0 %v171
    %592 = vmatprep.subr.bf16.mxu0 0
    %593 = vmatpush1.bf16.msra.mxu0 %v172
    %594 = vmatprep.subr.bf16.mxu0 0
    %595 = vmatpush1.bf16.msra.mxu0 %v173
    %596 = vmatprep.subr.bf16.mxu0 0
    %597 = vmatpush1.bf16.msra.mxu0 %v174
    %598 = vmatprep.subr.bf16.mxu0 0
    %599 = vmatpush1.bf16.msra.mxu0 0
    %600 = vmatprep.subr.bf16.mxu0 0
    %601 = vmatpush1.bf16.msra.mxu0 0
    %602 = vmatprep.subr.bf16.mxu0 0
    %603 = vmatpush1.bf16.msra.mxu0 0
    %604 = vmatprep.subr.bf16.mxu0 0
    %605 = vmatpush1.bf16.msra.mxu0 0
    %606 = vmatprep.subr.bf16.mxu0 0
    %607 = vmatpush1.bf16.msra.mxu0 0
    %608 = vmatprep.subr.bf16.mxu0 0
    %609 = vmatpush1.bf16.msra.mxu0 0
    %610 = vmatprep.subr.bf16.mxu0 0
    %611 = vmatpush1.bf16.msra.mxu0 0
    %612 = vmatprep.subr.bf16.mxu0 0
    %613 = vmatpush1.bf16.msra.mxu0 0
    %614 = vmatprep.subr.bf16.mxu0 0
    %615 = vmatpush1.bf16.msra.mxu0 0
    %616 = vmatprep.subr.bf16.mxu0 0
    %617 = vmatpush1.bf16.msra.mxu0 0
    %618 = vmatprep.subr.bf16.mxu0 0
    %619 = vmatpush1.bf16.msra.mxu0 0
    %620 = vmatprep.subr.bf16.mxu0 0
    %621 = vmatpush1.bf16.msra.mxu0 0
    %622 = vmatprep.mubr.bf16.mxu0 0
    %623 = vmatmul.mubr.bf16.gmra.mrb[0].mxu0 %v588
    %v624 = vpop.f32.mrb[0].mxu0
    %v625 = vadd.f32 0.0, %v624
    %v626 = vpop.f32.mrb[0].mxu0
    %v627 = vpop.f32.mrb[0].mxu0
    %v628 = vpop.f32.mrb[0].mxu0
    %629 = vdwg.mxu0
    %v630 = vadd.f32 %v133, %v625
    %v631 = vtanh.pop %v630
    %v632 = vmul.f32 %v631, 0.5
    %v633 = vadd.f32 %v632, 0.5
    %v634 = vmul.f32 %v633, %v563
    %636 = vrot.lane.b32.xlu0 %v631, 64
    %v637 = vpop.permute.xlu0 %636
    %v639 = vmul.f32 %v633, %v637
    %641 = vrot.lane.b32.xlu0 %v639, 32
    %v642 = vpop.permute.xlu0 %641
    %v644 = vadd.f32 %v634, %v642
    %v645 = vtanh.pop %v644
    %647 = vrot.lane.b32.xlu0 %v645, 64
    %v648 = vpop.permute.xlu0 %647
    %v650 = vmul.f32 %v633, %v648
    %652 = vrot.lane.b32.xlu0 %v650, 32
    %v653 = vpop.permute.xlu0 %652
    %v655 = vsel %vm248, %v653, 0.0
    %656 = vrot.lane.b32.xlu0 %v655, 64
    %v657 = vpop.permute.xlu0 %656
    %v658 = vsel %vm250, %v657, %v655
    %659 = vrot.lane.b32.xlu0 %v658, 64
    %v660 = vpop.permute.xlu0 %659
    %v661 = vsel %vm250, %v660, %v655
    %663 = vrot.lane.b32.xlu0 %v661, 96
    %v664 = vpop.permute.xlu0 %663
    %v666 = vsel %vm154, %v655, %v664
    %v667 = vpack.c.bf16 %v666, %v666
    %v669 = vsel %vm179, %v667, 0
    %671 = vmatprep.subr.bf16.mxu0 0
    %672 = vmatpush1.bf16.msra.mxu0 %v171
    %673 = vmatprep.subr.bf16.mxu0 0
    %674 = vmatpush1.bf16.msra.mxu0 %v172
    %675 = vmatprep.subr.bf16.mxu0 0
    %676 = vmatpush1.bf16.msra.mxu0 %v173
    %677 = vmatprep.subr.bf16.mxu0 0
    %678 = vmatpush1.bf16.msra.mxu0 %v174
    %679 = vmatprep.subr.bf16.mxu0 0
    %680 = vmatpush1.bf16.msra.mxu0 0
    %681 = vmatprep.subr.bf16.mxu0 0
    %682 = vmatpush1.bf16.msra.mxu0 0
    %683 = vmatprep.subr.bf16.mxu0 0
    %684 = vmatpush1.bf16.msra.mxu0 0
    %685 = vmatprep.subr.bf16.mxu0 0
    %686 = vmatpush1.bf16.msra.mxu0 0
    %687 = vmatprep.subr.bf16.mxu0 0
    %688 = vmatpush1.bf16.msra.mxu0 0
    %689 = vmatprep.subr.bf16.mxu0 0
    %690 = vmatpush1.bf16.msra.mxu0 0
    %691 = vmatprep.subr.bf16.mxu0 0
    %692 = vmatpush1.bf16.msra.mxu0 0
    %693 = vmatprep.subr.bf16.mxu0 0
    %694 = vmatpush1.bf16.msra.mxu0 0
    %695 = vmatprep.subr.bf16.mxu0 0
    %696 = vmatpush1.bf16.msra.mxu0 0
    %697 = vmatprep.subr.bf16.mxu0 0
    %698 = vmatpush1.bf16.msra.mxu0 0
    %699 = vmatprep.subr.bf16.mxu0 0
    %700 = vmatpush1.bf16.msra.mxu0 0
    %701 = vmatprep.subr.bf16.mxu0 0
    %702 = vmatpush1.bf16.msra.mxu0 0
    %703 = vmatprep.mubr.bf16.mxu0 0
    %704 = vmatmul.mubr.bf16.gmra.mrb[0].mxu0 %v669
    %v705 = vpop.f32.mrb[0].mxu0
    %v706 = vadd.f32 0.0, %v705
    %v707 = vpop.f32.mrb[0].mxu0
    %v708 = vpop.f32.mrb[0].mxu0
    %v709 = vpop.f32.mrb[0].mxu0
    %710 = vdwg.mxu0
    %v711 = vadd.f32 %v138, %v706
    %v712 = vtanh.pop %v711
    %v713 = vmul.f32 %v712, 0.5
    %v714 = vadd.f32 %v713, 0.5
    %v715 = vmul.f32 %v714, %v644
    %717 = vrot.lane.b32.xlu0 %v712, 64
    %v718 = vpop.permute.xlu0 %717
    %v720 = vmul.f32 %v714, %v718
    %722 = vrot.lane.b32.xlu0 %v720, 32
    %v723 = vpop.permute.xlu0 %722
    %v725 = vadd.f32 %v715, %v723
    %v726 = vtanh.pop %v725
    %728 = vrot.lane.b32.xlu0 %v726, 64
    %v729 = vpop.permute.xlu0 %728
    %v731 = vmul.f32 %v714, %v729
    %733 = vrot.lane.b32.xlu0 %v731, 32
    %v734 = vpop.permute.xlu0 %733
    %v736 = vsel %vm248, %v734, 0.0
    %737 = vrot.lane.b32.xlu0 %v736, 64
    %v738 = vpop.permute.xlu0 %737
    %v739 = vsel %vm250, %v738, %v736
    %740 = vrot.lane.b32.xlu0 %v739, 64
    %v741 = vpop.permute.xlu0 %740
    %v742 = vsel %vm250, %v741, %v736
    %744 = vrot.lane.b32.xlu0 %v742, 96
    %v745 = vpop.permute.xlu0 %744
    %v747 = vsel %vm154, %v736, %v745
    %v748 = vpack.c.bf16 %v747, %v747
    %v750 = vsel %vm179, %v748, 0
    %752 = vmatprep.subr.bf16.mxu0 0
    %753 = vmatpush1.bf16.msra.mxu0 %v171
    %754 = vmatprep.subr.bf16.mxu0 0
    %755 = vmatpush1.bf16.msra.mxu0 %v172
    %756 = vmatprep.subr.bf16.mxu0 0
    %757 = vmatpush1.bf16.msra.mxu0 %v173
    %758 = vmatprep.subr.bf16.mxu0 0
    %759 = vmatpush1.bf16.msra.mxu0 %v174
    %760 = vmatprep.subr.bf16.mxu0 0
    %761 = vmatpush1.bf16.msra.mxu0 0
    %762 = vmatprep.subr.bf16.mxu0 0
    %763 = vmatpush1.bf16.msra.mxu0 0
    %764 = vmatprep.subr.bf16.mxu0 0
    %765 = vmatpush1.bf16.msra.mxu0 0
    %766 = vmatprep.subr.bf16.mxu0 0
    %767 = vmatpush1.bf16.msra.mxu0 0
    %768 = vmatprep.subr.bf16.mxu0 0
    %769 = vmatpush1.bf16.msra.mxu0 0
    %770 = vmatprep.subr.bf16.mxu0 0
    %771 = vmatpush1.bf16.msra.mxu0 0
    %772 = vmatprep.subr.bf16.mxu0 0
    %773 = vmatpush1.bf16.msra.mxu0 0
    %774 = vmatprep.subr.bf16.mxu0 0
    %775 = vmatpush1.bf16.msra.mxu0 0
    %776 = vmatprep.subr.bf16.mxu0 0
    %777 = vmatpush1.bf16.msra.mxu0 0
    %778 = vmatprep.subr.bf16.mxu0 0
    %779 = vmatpush1.bf16.msra.mxu0 0
    %780 = vmatprep.subr.bf16.mxu0 0
    %781 = vmatpush1.bf16.msra.mxu0 0
    %782 = vmatprep.subr.bf16.mxu0 0
    %783 = vmatpush1.bf16.msra.mxu0 0
    %784 = vmatprep.mubr.bf16.mxu0 0
    %785 = vmatmul.mubr.bf16.gmra.mrb[0].mxu0 %v750
    %v786 = vpop.f32.mrb[0].mxu0
    %v787 = vadd.f32 0.0, %v786
    %v788 = vpop.f32.mrb[0].mxu0
    %v789 = vpop.f32.mrb[0].mxu0
    %v790 = vpop.f32.mrb[0].mxu0
    %791 = vdwg.mxu0
    %v792 = vadd.f32 %v141, %v787
    %v793 = vtanh.pop %v792
    %v794 = vmul.f32 %v793, 0.5
    %v795 = vadd.f32 %v794, 0.5
    %v796 = vmul.f32 %v795, %v725
    %798 = vrot.lane.b32.xlu0 %v793, 64
    %v799 = vpop.permute.xlu0 %798
    %v801 = vmul.f32 %v795, %v799
    %803 = vrot.lane.b32.xlu0 %v801, 32
    %v804 = vpop.permute.xlu0 %803
    %v806 = vadd.f32 %v796, %v804
    %v807 = vtanh.pop %v806
    %809 = vrot.lane.b32.xlu0 %v807, 64
    %v810 = vpop.permute.xlu0 %809
    %v812 = vmul.f32 %v795, %v810
    %v813 = vld [vmem:[%s3] sm:$0xff]
    %v814 = vld [vmem:[%s3 + $0x8] sm:$0xff]
    %v815 = vld [vmem:[%s3 + $0x10] sm:$0xff]
    %v816 = vld [vmem:[%s3 + $0x18] sm:$0xff]
    %v817 = vld [vmem:[%s4] sm:$0x1]
    %v819 = vlaneseq
    %v820 = vshrl.u32 %v819, 7
    %v821 = vsub.s32 0, %v820
    %v822 = vrot.slane %v817, %v821
    %825 = vrot.lane.b32.xlu0 %v812, 32
    %v826 = vpop.permute.xlu0 %825
    %v827 = vsel %vm248, %v826, 0
    %829 = vmatprep.subr.mxu0 0.0
    %830 = vmatpush1.msra.mxu0 %v813
    %831 = vmatprep.subr.mxu0 0.0
    %832 = vmatpush1.msra.mxu0 %v814
    %833 = vmatprep.subr.mxu0 0.0
    %834 = vmatpush1.msra.mxu0 %v815
    %835 = vmatprep.subr.mxu0 0.0
    %836 = vmatpush1.msra.mxu0 %v816
    %837 = vmatprep.subr.mxu0 0.0
    %838 = vmatpush1.msra.mxu0 0.0
    %839 = vmatprep.subr.mxu0 0.0
    %840 = vmatpush1.msra.mxu0 0.0
    %841 = vmatprep.subr.mxu0 0.0
    %842 = vmatpush1.msra.mxu0 0.0
    %843 = vmatprep.subr.mxu0 0.0
    %844 = vmatpush1.msra.mxu0 0.0
    %845 = vmatprep.subr.mxu0 0.0
    %846 = vmatpush1.msra.mxu0 0.0
    %847 = vmatprep.subr.mxu0 0.0
    %848 = vmatpush1.msra.mxu0 0.0
    %849 = vmatprep.subr.mxu0 0.0
    %850 = vmatpush1.msra.mxu0 0.0
    %851 = vmatprep.subr.mxu0 0.0
    %852 = vmatpush1.msra.mxu0 0.0
    %853 = vmatprep.subr.mxu0 0.0
    %854 = vmatpush1.msra.mxu0 0.0
    %855 = vmatprep.subr.mxu0 0.0
    %856 = vmatpush1.msra.mxu0 0.0
    %857 = vmatprep.subr.mxu0 0.0
    %858 = vmatpush1.msra.mxu0 0.0
    %859 = vmatprep.subr.mxu0 0.0
    %860 = vmatpush1.msra.mxu0 0.0
    %861 = vmatprep.subr.mxu0 0.0
    %862 = vmatpush1.msra.mxu0 0.0
    %863 = vmatprep.subr.mxu0 0.0
    %864 = vmatpush1.msra.mxu0 0.0
    %865 = vmatprep.subr.mxu0 0.0
    %866 = vmatpush1.msra.mxu0 0.0
    %867 = vmatprep.subr.mxu0 0.0
    %868 = vmatpush1.msra.mxu0 0.0
    %869 = vmatprep.subr.mxu0 0.0
    %870 = vmatpush1.msra.mxu0 0.0
    %871 = vmatprep.subr.mxu0 0.0
    %872 = vmatpush1.msra.mxu0 0.0
    %873 = vmatprep.subr.mxu0 0.0
    %874 = vmatpush1.msra.mxu0 0.0
    %875 = vmatprep.subr.mxu0 0.0
    %876 = vmatpush1.msra.mxu0 0.0
    %877 = vmatprep.subr.mxu0 0.0
    %878 = vmatpush1.msra.mxu0 0.0
    %879 = vmatprep.subr.mxu0 0.0
    %880 = vmatpush1.msra.mxu0 0.0
    %881 = vmatprep.subr.mxu0 0.0
    %882 = vmatpush1.msra.mxu0 0.0
    %883 = vmatprep.subr.mxu0 0.0
    %884 = vmatpush1.msra.mxu0 0.0
    %885 = vmatprep.subr.mxu0 0.0
    %886 = vmatpush1.msra.mxu0 0.0
    %887 = vmatprep.subr.mxu0 0.0
    %888 = vmatpush1.msra.mxu0 0.0
    %889 = vmatprep.subr.mxu0 0.0
    %890 = vmatpush1.msra.mxu0 0.0
    %891 = vmatprep.subr.mxu0 0.0
    %892 = vmatpush1.msra.mxu0 0.0
    %893 = vmatprep.mubr.f32.mxu0 0.0
    %894 = vmatmul.mubr.f32.gmra.mrb[0].mxu0 %v827
    %v895 = vpop.f32.mrb[0].mxu0
    %v896 = vadd.f32 %v822, %v895
    %v897 = vpop.f32.mrb[0].mxu0
    %898 = vdwg.mxu0
    %vm899 = vcmask 64512
    %900 = vst.msk [vmem:[#allocation2] sm:$0xff] %vm899, %v896
    // Predicated region
    $region22: #{lstm_forward.1} parent=1 // pred_check
      _
    $region23: #{lstm_forward.1} parent=1 // pred_check_branch
      %902 = sbr.rel (0) target = $region25
    $region24: #{lstm_forward.1} parent=1 // pred_region
      %s904 = ssub.s32 128, 128
      %905 = vsyncadd [#allocation3], %s904
      %s907 = sshll.u32 [#allocation2], 4
      %s908 = int_to_ptr.vmem [resolvable:$true] %s907
      %910 = dma.vmem_to_hbm [thread:$0]  %s908, 128, %s5, [#allocation3]
    $region25: #{lstm_forward.1} parent=1 // pred_fallthru
      _
    // Predicated region
    $region26: #{lstm_forward.1} parent=1 // pred_check
      _
    $region27: #{lstm_forward.1} parent=1 // pred_check_branch
      %912 = sbr.rel (0) target = $region29
    $region28: #{lstm_forward.1} parent=1 // pred_region
      %913 = dma.done [#allocation3], 128
    $region29: #{lstm_forward.1} parent=1 // pred_fallthru
      _
    %914 = vsyncpa [#allocation3], 1

</llo_original>
